<compile_context>
chip_gen: v7x
topology: tpu7x:2x2x1
jax: 0.10.0
libtpu: 0.0.40
codegen_flags: <defaults>
</compile_context>

<pallas_src>
import functools
import math

import jax
import jax.numpy as jnp
import numpy as np
from jax.experimental import pallas as pl
from jax.experimental.pallas import tpu as pltpu

# Prior constants (weight prior: mu=0, sigma=25, alpha=0.25; bias prior: mu=0, sigma=1)
_LOG_SIGMA_PRIOR = math.log(25.0)
_LOG_ALPHA_PRIOR = math.log(0.25)
_LOG_1M_ALPHA_PRIOR = math.log(1.0 - 0.25)
_INV_TWO_SIGMA_PRIOR_SQ = 1.0 / (2.0 * 25.0 ** 2)

_LANE = 128
_SUBLANE = 8


def _softplus(x):
    # Numerically stable softplus: max(x, 0) + log1p(exp(-|x|))  (no overflow).
    return jnp.maximum(x, 0.0) + jnp.log1p(jnp.exp(-jnp.abs(x)))


def _make_kernel(matmul_dtype):
    def bayes_linear_lrt_kernel(x_ref, wmu_ref, wrho_ref, lam_ref,
                                bmu_ref, brho_ref, eps_ref,
                                act_ref, kl_ref,
                                ew_sc, varw_sc, bvar_sc):
        n = pl.program_id(1)

        # EUP-heavy weight-posterior transforms + KL partials: computed once per
        # O tile (inner N axis is "arbitrary"), cached in VMEM scratch.
        @pl.when(n == 0)
        def _():
            w_mu = wmu_ref[...].astype(jnp.float32)    # [F, tO]
            w_rho = wrho_ref[...].astype(jnp.float32)  # [F, tO]
            lam = lam_ref[...].astype(jnp.float32)     # [F, tO]

            sp_pos = _softplus(lam)                    # -log(1 - alpha_q)
            sp_neg = sp_pos - lam                      # softplus(-lam) = -log(alpha_q)
            alpha_q = jnp.exp(-sp_neg)                 # sigmoid(lambdal)
            w_sigma = _softplus(w_rho)                 # softplus(weight_rho)

            e_w = w_mu * alpha_q
            var_w = alpha_q * (w_sigma * w_sigma + (1.0 - alpha_q) * w_mu * w_mu)
            ew_sc[...] = e_w.astype(ew_sc.dtype)
            varw_sc[...] = var_w.astype(varw_sc.dtype)

            b_mu = bmu_ref[...]                        # [1, tO]
            b_sigma = _softplus(brho_ref[...])
            bvar_sc[...] = b_sigma * b_sigma

            # KL per output column (wrapper slices valid cols + sums).
            kl_w_elem = (
                alpha_q * ((_LOG_SIGMA_PRIOR - _LOG_ALPHA_PRIOR - 0.5)
                           - jnp.log(w_sigma) - sp_neg
                           + (w_sigma * w_sigma + w_mu * w_mu)
                           * _INV_TWO_SIGMA_PRIOR_SQ)
                + (1.0 - alpha_q) * (-sp_pos - _LOG_1M_ALPHA_PRIOR))
            kl_b_col = (-jnp.log(b_sigma) - 0.5
                        + 0.5 * (b_sigma * b_sigma + b_mu * b_mu))
            kl_ref[...] = jnp.sum(kl_w_elem, axis=0, keepdims=True) + kl_b_col

        # Local reparameterization trick: two MXU matmuls per (O, N) tile.
        x = x_ref[...]                                  # [tN, F] f32
        xm = x.astype(matmul_dtype)
        x2m = (x * x).astype(matmul_dtype)
        e_b = (jnp.dot(xm, ew_sc[...], preferred_element_type=jnp.float32)
               + bmu_ref[...])                                            # [tN, tO]
        var_b = (jnp.dot(x2m, varw_sc[...], preferred_element_type=jnp.float32)
                 + bvar_sc[...])                                          # [tN, tO]
        act_ref[...] = (e_b + jnp.sqrt(var_b) * eps_ref[...]).astype(act_ref.dtype)

    return bayes_linear_lrt_kernel


def _vmem_capacity_bytes():
    try:
        return int(pltpu.get_tpu_info().vmem_capacity_bytes)
    except Exception:
        return 64 << 20  # conservative: v7x has 64 MiB / TensorCore


def _round_down(x, m):
    return max(m, (x // m) * m)


def bayesian_network_forward(x, params, eps, *, o_tile=None, n_tile=None,
                             matmul_dtype=jnp.float32,
                             weight_stream_dtype=jnp.bfloat16):
    """Forward of the BayesianNetwork (LRT / training branch).

    Returns (activations [N, O], kl scalar).  `params` holds PyTorch-layout
    parameters; the wrapper pre-transposes/pads them and streams the three
    weight tensors as `weight_stream_dtype` (bf16 by default) to halve HBM
    traffic.  `matmul_dtype=jnp.bfloat16` additionally runs the two MXU
    matmuls in bf16 for large-N, compute-bound deployments.
    """
    x = x.astype(jnp.float32)
    N, F = x.shape
    O = params["weight_mu"].shape[0]

    # ---- tile selection (HBM-roofline-friendly, VMEM-budgeted) --------------
    o_pad_min = _LANE * pl.cdiv(O, _LANE)
    n_pad_min = _SUBLANE * pl.cdiv(N, _SUBLANE)
    if o_tile is None:
        o_tile = min(512, o_pad_min)       # 512 = multiple of 256 (v6e/v7x MXU)
    o_tile = _round_down(o_tile, _LANE)
    if n_tile is None:
        n_tile = min(512, n_pad_min)
    n_tile = _round_down(n_tile, _SUBLANE)

    w_itm = np.dtype(weight_stream_dtype).itemsize
    mm_itm = np.dtype(matmul_dtype).itemsize
    cap = _vmem_capacity_bytes()
    budget = min(int(0.5 * cap), 40 << 20)  # keeps double-buffering safe on v7x

    def vmem_need(ot, nt):
        streamed = 2 * (3 * F * ot * w_itm      # weight blocks (double-buffered)
                        + 2 * ot * 4            # bias blocks
                        + 2 * nt * ot * 4       # eps in + act out
                        + ot * 4                # kl out
                        + nt * F * 4)           # x block
        scratch = 2 * F * ot * mm_itm + ot * 4
        return streamed + scratch

    while vmem_need(o_tile, n_tile) > budget and o_tile > _LANE:
        o_tile = _round_down(o_tile // 2, _LANE)
    while vmem_need(o_tile, n_tile) > budget and n_tile > _SUBLANE:
        n_tile = _round_down(n_tile // 2, _SUBLANE)

    n_o = pl.cdiv(O, o_tile)
    n_n = pl.cdiv(N, n_tile)
    o_pad = n_o * o_tile
    n_pad = n_n * n_tile

    def pad2(a, rows, cols):
        pr, pc = rows - a.shape[0], cols - a.shape[1]
        return a if (pr == 0 and pc == 0) else jnp.pad(a, ((0, pr), (0, pc)))

    # Pre-transpose to [F, O] (native MXU RHS) + zero-pad O; cast to the
    # streaming dtype.  Zeros keep all KL terms finite; padded columns/rows are
    # discarded by the wrapper.
    w_mu_t = pad2(params["weight_mu"].astype(jnp.float32).T, F, o_pad).astype(weight_stream_dtype)
    w_rho_t = pad2(params["weight_rho"].astype(jnp.float32).T, F, o_pad).astype(weight_stream_dtype)
    lam_t = pad2(params["lambdal"].astype(jnp.float32).T, F, o_pad).astype(weight_stream_dtype)
    b_mu = pad2(params["bias_mu"].astype(jnp.float32).reshape(1, O), 1, o_pad)
    b_rho = pad2(params["bias_rho"].astype(jnp.float32).reshape(1, O), 1, o_pad)
    x_p = pad2(x, n_pad, F)
    eps_p = pad2(eps.astype(jnp.float32), n_pad, o_pad)

    weight_spec = pl.BlockSpec((F, o_tile), lambda o, n: (0, o))
    bias_spec = pl.BlockSpec((1, o_tile), lambda o, n: (0, o))
    x_spec = pl.BlockSpec((n_tile, F), lambda o, n: (n, 0))
    no_spec = pl.BlockSpec((n_tile, o_tile), lambda o, n: (n, o))
    kl_spec = pl.BlockSpec((1, o_tile), lambda o, n: (0, o))

    vmem_limit = int(min(max(2 * vmem_need(o_tile, n_tile), 32 << 20),
                         int(0.8 * cap)))

    cost = pl.CostEstimate(
        flops=int(4 * n_pad * F * o_pad + 32 * F * o_pad),
        transcendentals=int(7 * F * o_pad + 5 * o_pad),
        bytes_accessed=int(n_o * n_pad * F * 4 + 3 * F * o_pad * w_itm
                           + 2 * o_pad * 4 + 2 * n_pad * o_pad * 4 + o_pad * 4),
    )

    act_pad, kl_cols = pl.pallas_call(
        _make_kernel(matmul_dtype),
        grid=(n_o, n_n),
        in_specs=[x_spec,        # x
                  weight_spec,   # weight_mu^T   (bf16 stream)
                  weight_spec,   # weight_rho^T  (bf16 stream)
                  weight_spec,   # lambdal^T     (bf16 stream)
                  bias_spec,     # bias_mu
                  bias_spec,     # bias_rho
                  no_spec],      # eps
        out_specs=(no_spec, kl_spec),
        out_shape=(jax.ShapeDtypeStruct((n_pad, o_pad), jnp.float32),
                   jax.ShapeDtypeStruct((1, o_pad), jnp.float32)),
        scratch_shapes=[pltpu.VMEM((F, o_tile), matmul_dtype),   # e_w cache
                        pltpu.VMEM((F, o_tile), matmul_dtype),   # var_w cache
                        pltpu.VMEM((1, o_tile), jnp.float32)],   # bias_sigma^2
        compiler_params=pltpu.CompilerParams(
            dimension_semantics=("parallel", "arbitrary"),
            vmem_limit_bytes=vmem_limit),
        cost_estimate=cost,
    )(x_p, w_mu_t, w_rho_t, lam_t, b_mu, b_rho, eps_p)

    act = act_pad[:N, :O]
    kl = jnp.sum(kl_cols[0, :O])
    return act, kl


def bayesian_network_forward_multisample(x, params, eps_s, **kw):
    """Fold S Monte-Carlo draws into the batch dim (eps_s: [S, N, O]) so weight
    DMA, the softplus/exp transforms and the KL are paid once per S samples."""
    S, N, O = eps_s.shape
    x_rep = jnp.broadcast_to(x[None], (S,) + x.shape).reshape(S * N, x.shape[1])
    act, kl = bayesian_network_forward(x_rep, params, eps_s.reshape(S * N, O), **kw)
    return act.reshape(S, N, O), kl


def init_params(key, in_features, out_features):
    """Deterministic init mirroring the PyTorch __init__ uniforms (PyTorch layout)."""
    k1, k2, k3, k4, k5 = jax.random.split(key, 5)
    return {
        "weight_mu": jax.random.uniform(k1, (out_features, in_features),
                                        jnp.float32, -0.01, 0.01),
        "weight_rho": jax.random.uniform(k2, (out_features, in_features),
                                         jnp.float32, -5.0, -4.0),
        "lambdal": jax.random.uniform(k3, (out_features, in_features),
                                      jnp.float32, 0.0, 1.0),
        "bias_mu": jax.random.uniform(k4, (out_features,),
                                      jnp.float32, -0.01, 0.01),
        "bias_rho": jax.random.uniform(k5, (out_features,),
                                       jnp.float32, -5.0, -4.0),
    }


def _quantize_params(params, dtype):
    """Round the streamed weight tensors to `dtype` (and back to f32) so the
    pure-JAX reference sees exactly the values the kernel streams."""
    q = dict(params)
    for k in ("weight_mu", "weight_rho", "lambdal"):
        q[k] = params[k].astype(dtype).astype(jnp.float32)
    return q


def reference_forward(x, params, eps):
    """Pure-JAX reference of the PyTorch LRT branch (original formulas/layout)."""
    alpha_q = jax.nn.sigmoid(params["lambdal"])
    w_sigma = jnp.log1p(jnp.exp(params["weight_rho"]))
    b_sigma = jnp.log1p(jnp.exp(params["bias_rho"]))
    e_w = params["weight_mu"] * alpha_q
    var_w = alpha_q * (w_sigma ** 2 + (1.0 - alpha_q) * params["weight_mu"] ** 2)
    e_b = x @ e_w.T + params["bias_mu"][None, :]
    var_b = (x ** 2) @ var_w.T + (b_sigma ** 2)[None, :]
    act = e_b + jnp.sqrt(var_b) * eps
    kl_bias = jnp.sum(jnp.log(1.0 / b_sigma) - 0.5
                      + (b_sigma ** 2 + params["bias_mu"] ** 2) / 2.0)
    kl_weight = jnp.sum(
        alpha_q * (jnp.log(25.0 / w_sigma) - 0.5 + jnp.log(alpha_q / 0.25)
                   + (w_sigma ** 2 + params["weight_mu"] ** 2) / (2.0 * 25.0 ** 2))
        + (1.0 - alpha_q) * jnp.log((1.0 - alpha_q) / (1.0 - 0.25)))
    return act, kl_bias + kl_weight


if __name__ == "__main__":
    # Abalone-style shapes: p - 1 = 8 input features, 1 output, small batch.
    N, F, O = 16, 8, 1
    key = jax.random.PRNGKey(0)
    kx, keps, keps_s, kparams = jax.random.split(key, 4)

    x = jax.random.normal(kx, (N, F), dtype=jnp.float32)
    eps = jax.random.normal(keps, (N, O), dtype=jnp.float32)
    params = init_params(kparams, F, O)
    params_q = _quantize_params(params, jnp.bfloat16)  # what the kernel streams
    act_ref, kl_ref = reference_forward(x, params_q, eps)

    # 1) Default path: bf16 weight streaming, f32 MXU matmuls (strict check).
    act, kl = jax.jit(bayesian_network_forward)(x, params, eps)
    jax.block_until_ready((act, kl))
    np.testing.assert_allclose(np.asarray(act), np.asarray(act_ref),
                               rtol=1e-4, atol=1e-5)
    np.testing.assert_allclose(np.asarray(kl), np.asarray(kl_ref),
                               rtol=1e-4, atol=1e-5)

    # 2) bf16-matmul path (large-N / MXU-bound deployments): loose act check,
    #    KL stays f32 so it remains strict.
    fwd_bf16 = jax.jit(functools.partial(bayesian_network_forward,
                                         matmul_dtype=jnp.bfloat16))
    act_b, kl_b = fwd_bf16(x, params, eps)
    jax.block_until_ready((act_b, kl_b))
    np.testing.assert_allclose(np.asarray(act_b), np.asarray(act_ref),
                               rtol=5e-2, atol=2e-3)
    np.testing.assert_allclose(np.asarray(kl_b), np.asarray(kl_ref),
                               rtol=1e-4, atol=1e-5)

    # 3) Multi-sample batching: S posterior draws in one kernel call.
    S = 4
    eps_s = jax.random.normal(keps_s, (S, N, O), dtype=jnp.float32)
    act_s, kl_s = jax.jit(bayesian_network_forward_multisample)(x, params, eps_s)
    jax.block_until_ready((act_s, kl_s))
    act_s_ref = jnp.stack([reference_forward(x, params_q, eps_s[i])[0]
                           for i in range(S)])
    np.testing.assert_allclose(np.asarray(act_s), np.asarray(act_s_ref),
                               rtol=1e-4, atol=1e-5)
    np.testing.assert_allclose(np.asarray(kl_s), np.asarray(kl_ref),
                               rtol=1e-4, atol=1e-5)

    print("KERNEL_OK")
</pallas_src>

<mosaic_0001>
module attributes {stable_mosaic.version = 11 : i64} {
  func.func @bayes_linear_lrt_kernel(%arg0: i32, %arg1: i32, %arg2: memref<16x8xf32, #tpu.memory_space<vmem>>, %arg3: memref<8x128xbf16, #tpu.memory_space<vmem>>, %arg4: memref<8x128xbf16, #tpu.memory_space<vmem>>, %arg5: memref<8x128xbf16, #tpu.memory_space<vmem>>, %arg6: memref<1x128xf32, #tpu.memory_space<vmem>>, %arg7: memref<1x128xf32, #tpu.memory_space<vmem>>, %arg8: memref<16x128xf32, #tpu.memory_space<vmem>>, %arg9: memref<16x128xf32, #tpu.memory_space<vmem>>, %arg10: memref<1x128xf32, #tpu.memory_space<vmem>>, %arg11: memref<8x128xf32, #tpu.memory_space<vmem>>, %arg12: memref<8x128xf32, #tpu.memory_space<vmem>>, %arg13: memref<1x128xf32, #tpu.memory_space<vmem>>) attributes {dimension_semantics = [#tpu.dimension_semantics<parallel>, #tpu.dimension_semantics<arbitrary>], iteration_bounds = array<i64: 1, 1>, scalar_prefetch = 0 : i64, scratch_operands = 3 : i64, tpu.core_type = #tpu.core_type<tc>, window_params = [{transform_indices = @transform_0, window_bounds = array<i64: 16, 8>}, {transform_indices = @transform_1, window_bounds = array<i64: 8, 128>}, {transform_indices = @transform_2, window_bounds = array<i64: 8, 128>}, {transform_indices = @transform_3, window_bounds = array<i64: 8, 128>}, {transform_indices = @transform_4, window_bounds = array<i64: 1, 128>}, {transform_indices = @transform_5, window_bounds = array<i64: 1, 128>}, {transform_indices = @transform_6, window_bounds = array<i64: 16, 128>}, {transform_indices = @transform_7, window_bounds = array<i64: 16, 128>}, {transform_indices = @transform_8, window_bounds = array<i64: 1, 128>}]} {
    %c0_i32 = arith.constant 0 : i32
    %0 = arith.cmpi eq, %arg1, %c0_i32 : i32
    %1 = arith.extui %0 : i1 to i32
    %c0_i32_0 = arith.constant 0 : i32
    %2 = arith.cmpi ne, %1, %c0_i32_0 : i32
    scf.if %2 {
      %c0_15 = arith.constant 0 : index
      %c0_16 = arith.constant 0 : index
      %20 = vector.load %arg3[%c0_15, %c0_16] : memref<8x128xbf16, #tpu.memory_space<vmem>>, vector<8x128xbf16>
      %21 = arith.extf %20 : vector<8x128xbf16> to vector<8x128xf32>
      %c0_17 = arith.constant 0 : index
      %c0_18 = arith.constant 0 : index
      %22 = vector.load %arg4[%c0_17, %c0_18] : memref<8x128xbf16, #tpu.memory_space<vmem>>, vector<8x128xbf16>
      %23 = arith.extf %22 : vector<8x128xbf16> to vector<8x128xf32>
      %c0_19 = arith.constant 0 : index
      %c0_20 = arith.constant 0 : index
      %24 = vector.load %arg5[%c0_19, %c0_20] : memref<8x128xbf16, #tpu.memory_space<vmem>>, vector<8x128xbf16>
      %25 = arith.extf %24 : vector<8x128xbf16> to vector<8x128xf32>
      %cst_21 = arith.constant 0.000000e+00 : f32
      %26 = vector.broadcast %cst_21 : f32 to vector<8x128xf32>
      %27 = arith.maximumf %25, %26 : vector<8x128xf32>
      %28 = math.absf %25 : vector<8x128xf32>
      %cst_22 = arith.constant 0.000000e+00 : f32
      %29 = vector.broadcast %cst_22 : f32 to vector<8x128xf32>
      %30 = arith.subf %29, %28 : vector<8x128xf32>
      %31 = math.exp %30 : vector<8x128xf32>
      %32 = math.log1p %31 : vector<8x128xf32>
      %33 = arith.addf %27, %32 : vector<8x128xf32>
      %34 = arith.subf %33, %25 : vector<8x128xf32>
      %cst_23 = arith.constant 0.000000e+00 : f32
      %35 = vector.broadcast %cst_23 : f32 to vector<8x128xf32>
      %36 = arith.subf %35, %34 : vector<8x128xf32>
      %37 = math.exp %36 : vector<8x128xf32>
      %cst_24 = arith.constant 0.000000e+00 : f32
      %38 = vector.broadcast %cst_24 : f32 to vector<8x128xf32>
      %39 = arith.maximumf %23, %38 : vector<8x128xf32>
      %40 = math.absf %23 : vector<8x128xf32>
      %cst_25 = arith.constant 0.000000e+00 : f32
      %41 = vector.broadcast %cst_25 : f32 to vector<8x128xf32>
      %42 = arith.subf %41, %40 : vector<8x128xf32>
      %43 = math.exp %42 : vector<8x128xf32>
      %44 = math.log1p %43 : vector<8x128xf32>
      %45 = arith.addf %39, %44 : vector<8x128xf32>
      %46 = arith.mulf %21, %37 : vector<8x128xf32>
      %47 = arith.mulf %45, %45 : vector<8x128xf32>
      %cst_26 = arith.constant 1.000000e+00 : f32
      %48 = vector.broadcast %cst_26 : f32 to vector<8x128xf32>
      %49 = arith.subf %48, %37 : vector<8x128xf32>
      %50 = arith.mulf %49, %21 : vector<8x128xf32>
      %51 = arith.mulf %50, %21 : vector<8x128xf32>
      %52 = arith.addf %47, %51 : vector<8x128xf32>
      %53 = arith.mulf %37, %52 : vector<8x128xf32>
      %c0_27 = arith.constant 0 : index
      %c0_28 = arith.constant 0 : index
      %54 = vector.load %arg11[%c0_27, %c0_28] : memref<8x128xf32, #tpu.memory_space<vmem>>, vector<8x128xf32>
      tpu.vector_store %arg11[%c0_27, %c0_28], %46 {strides = array<i32>} : memref<8x128xf32, #tpu.memory_space<vmem>>, vector<8x128xf32>,
      %c0_29 = arith.constant 0 : index
      %c0_30 = arith.constant 0 : index
      %55 = vector.load %arg12[%c0_29, %c0_30] : memref<8x128xf32, #tpu.memory_space<vmem>>, vector<8x128xf32>
      tpu.vector_store %arg12[%c0_29, %c0_30], %53 {strides = array<i32>} : memref<8x128xf32, #tpu.memory_space<vmem>>, vector<8x128xf32>,
      %c0_31 = arith.constant 0 : index
      %c0_32 = arith.constant 0 : index
      %56 = vector.load %arg6[%c0_31, %c0_32] : memref<1x128xf32, #tpu.memory_space<vmem>>, vector<1x128xf32>
      %c0_33 = arith.constant 0 : index
      %c0_34 = arith.constant 0 : index
      %57 = vector.load %arg7[%c0_33, %c0_34] : memref<1x128xf32, #tpu.memory_space<vmem>>, vector<1x128xf32>
      %cst_35 = arith.constant 0.000000e+00 : f32
      %58 = vector.broadcast %cst_35 : f32 to vector<1x128xf32>
      %59 = arith.maximumf %57, %58 : vector<1x128xf32>
      %60 = math.absf %57 : vector<1x128xf32>
      %cst_36 = arith.constant 0.000000e+00 : f32
      %61 = vector.broadcast %cst_36 : f32 to vector<1x128xf32>
      %62 = arith.subf %61, %60 : vector<1x128xf32>
      %63 = math.exp %62 : vector<1x128xf32>
      %64 = math.log1p %63 : vector<1x128xf32>
      %65 = arith.addf %59, %64 : vector<1x128xf32>
      %66 = arith.mulf %65, %65 : vector<1x128xf32>
      %c0_37 = arith.constant 0 : index
      %c0_38 = arith.constant 0 : index
      %67 = vector.load %arg13[%c0_37, %c0_38] : memref<1x128xf32, #tpu.memory_space<vmem>>, vector<1x128xf32>
      tpu.vector_store %arg13[%c0_37, %c0_38], %66 {strides = array<i32>} : memref<1x128xf32, #tpu.memory_space<vmem>>, vector<1x128xf32>,
      %68 = math.log %45 : vector<8x128xf32>
      %cst_39 = arith.constant 4.10517025 : f32
      %69 = vector.broadcast %cst_39 : f32 to vector<8x128xf32>
      %70 = arith.subf %69, %68 : vector<8x128xf32>
      %71 = arith.subf %70, %34 : vector<8x128xf32>
      %72 = arith.mulf %45, %45 : vector<8x128xf32>
      %73 = arith.mulf %21, %21 : vector<8x128xf32>
      %74 = arith.addf %72, %73 : vector<8x128xf32>
      %cst_40 = arith.constant 8.000000e-04 : f32
      %75 = vector.broadcast %cst_40 : f32 to vector<8x128xf32>
      %76 = arith.mulf %74, %75 : vector<8x128xf32>
      %77 = arith.addf %71, %76 : vector<8x128xf32>
      %78 = arith.mulf %37, %77 : vector<8x128xf32>
      %cst_41 = arith.constant 1.000000e+00 : f32
      %79 = vector.broadcast %cst_41 : f32 to vector<8x128xf32>
      %80 = arith.subf %79, %37 : vector<8x128xf32>
      %cst_42 = arith.constant 0.000000e+00 : f32
      %81 = vector.broadcast %cst_42 : f32 to vector<8x128xf32>
      %82 = arith.subf %81, %33 : vector<8x128xf32>
      %cst_43 = arith.constant -0.287682086 : f32
      %83 = vector.broadcast %cst_43 : f32 to vector<8x128xf32>
      %84 = arith.subf %82, %83 : vector<8x128xf32>
      %85 = arith.mulf %80, %84 : vector<8x128xf32>
      %86 = arith.addf %78, %85 : vector<8x128xf32>
      %87 = math.log %65 : vector<1x128xf32>
      %cst_44 = arith.constant 0.000000e+00 : f32
      %88 = vector.broadcast %cst_44 : f32 to vector<1x128xf32>
      %89 = arith.subf %88, %87 : vector<1x128xf32>
      %cst_45 = arith.constant 5.000000e-01 : f32
      %90 = vector.broadcast %cst_45 : f32 to vector<1x128xf32>
      %91 = arith.subf %89, %90 : vector<1x128xf32>
      %92 = arith.mulf %65, %65 : vector<1x128xf32>
      %93 = arith.mulf %56, %56 : vector<1x128xf32>
      %94 = arith.addf %92, %93 : vector<1x128xf32>
      %cst_46 = arith.constant 5.000000e-01 : f32
      %95 = vector.broadcast %cst_46 : f32 to vector<1x128xf32>
      %96 = arith.mulf %95, %94 : vector<1x128xf32>
      %97 = arith.addf %91, %96 : vector<1x128xf32>
      %cst_47 = arith.constant dense<0.000000e+00> : vector<128xf32>
      %98 = vector.multi_reduction <add>, %86, %cst_47 [0] : vector<8x128xf32> to vector<128xf32>
      %99 = vector.shape_cast %98 : vector<128xf32> to vector<1x128xf32>
      %100 = arith.addf %99, %97 : vector<1x128xf32>
      %c0_48 = arith.constant 0 : index
      %c0_49 = arith.constant 0 : index
      %101 = vector.load %arg10[%c0_48, %c0_49] : memref<1x128xf32, #tpu.memory_space<vmem>>, vector<1x128xf32>
      tpu.vector_store %arg10[%c0_48, %c0_49], %100 {strides = array<i32>} : memref<1x128xf32, #tpu.memory_space<vmem>>, vector<1x128xf32>,
    } else {
    }
    %c0 = arith.constant 0 : index
    %c0_1 = arith.constant 0 : index
    %3 = vector.load %arg2[%c0, %c0_1] : memref<16x8xf32, #tpu.memory_space<vmem>>, vector<16x8xf32>
    %4 = arith.mulf %3, %3 : vector<16x8xf32>
    %c0_2 = arith.constant 0 : index
    %c0_3 = arith.constant 0 : index
    %5 = vector.load %arg11[%c0_2, %c0_3] : memref<8x128xf32, #tpu.memory_space<vmem>>, vector<8x128xf32>
    %cst = arith.constant dense<0.000000e+00> : vector<16x128xf32>
    %6 = tpu.matmul %3, %5, %cst {dimension_numbers = #tpu.dot_dimension_numbers<[1], [0], [0], [1], [0, 0, 1, 1], [], []>} : vector<16x8xf32>, vector<8x128xf32>, vector<16x128xf32> -> vector<16x128xf32>
    %c0_4 = arith.constant 0 : index
    %c0_5 = arith.constant 0 : index
    %7 = vector.load %arg6[%c0_4, %c0_5] : memref<1x128xf32, #tpu.memory_space<vmem>>, vector<1x128xf32>
    %8 = vector.broadcast %7 : vector<1x128xf32> to vector<16x128xf32>
    %9 = arith.addf %6, %8 : vector<16x128xf32>
    %c0_6 = arith.constant 0 : index
    %c0_7 = arith.constant 0 : index
    %10 = vector.load %arg12[%c0_6, %c0_7] : memref<8x128xf32, #tpu.memory_space<vmem>>, vector<8x128xf32>
    %cst_8 = arith.constant dense<0.000000e+00> : vector<16x128xf32>
    %11 = tpu.matmul %4, %10, %cst_8 {dimension_numbers = #tpu.dot_dimension_numbers<[1], [0], [0], [1], [0, 0, 1, 1], [], []>} : vector<16x8xf32>, vector<8x128xf32>, vector<16x128xf32> -> vector<16x128xf32>
    %c0_9 = arith.constant 0 : index
    %c0_10 = arith.constant 0 : index
    %12 = vector.load %arg13[%c0_9, %c0_10] : memref<1x128xf32, #tpu.memory_space<vmem>>, vector<1x128xf32>
    %13 = vector.broadcast %12 : vector<1x128xf32> to vector<16x128xf32>
    %14 = arith.addf %11, %13 : vector<16x128xf32>
    %15 = math.sqrt %14 : vector<16x128xf32>
    %c0_11 = arith.constant 0 : index
    %c0_12 = arith.constant 0 : index
    %16 = vector.load %arg8[%c0_11, %c0_12] : memref<16x128xf32, #tpu.memory_space<vmem>>, vector<16x128xf32>
    %17 = arith.mulf %15, %16 : vector<16x128xf32>
    %18 = arith.addf %9, %17 : vector<16x128xf32>
    %c0_13 = arith.constant 0 : index
    %c0_14 = arith.constant 0 : index
    %19 = vector.load %arg9[%c0_13, %c0_14] : memref<16x128xf32, #tpu.memory_space<vmem>>, vector<16x128xf32>
    tpu.vector_store %arg9[%c0_13, %c0_14], %18 {strides = array<i32>} : memref<16x128xf32, #tpu.memory_space<vmem>>, vector<16x128xf32>,
    return
  }
  func.func @transform_0(%arg0: i32, %arg1: i32) -> (i32, i32) {
    %c0_i32 = arith.constant 0 : i32
    %c0_i32_0 = arith.constant 0 : i32
    return %arg1, %c0_i32 : i32, i32
  }
  func.func @transform_1(%arg0: i32, %arg1: i32) -> (i32, i32) {
    %c0_i32 = arith.constant 0 : i32
    %c0_i32_0 = arith.constant 0 : i32
    return %c0_i32, %arg0 : i32, i32
  }
  func.func @transform_2(%arg0: i32, %arg1: i32) -> (i32, i32) {
    %c0_i32 = arith.constant 0 : i32
    %c0_i32_0 = arith.constant 0 : i32
    return %c0_i32, %arg0 : i32, i32
  }
  func.func @transform_3(%arg0: i32, %arg1: i32) -> (i32, i32) {
    %c0_i32 = arith.constant 0 : i32
    %c0_i32_0 = arith.constant 0 : i32
    return %c0_i32, %arg0 : i32, i32
  }
  func.func @transform_4(%arg0: i32, %arg1: i32) -> (i32, i32) {
    %c0_i32 = arith.constant 0 : i32
    %c0_i32_0 = arith.constant 0 : i32
    return %c0_i32, %arg0 : i32, i32
  }
  func.func @transform_5(%arg0: i32, %arg1: i32) -> (i32, i32) {
    %c0_i32 = arith.constant 0 : i32
    %c0_i32_0 = arith.constant 0 : i32
    return %c0_i32, %arg0 : i32, i32
  }
  func.func @transform_6(%arg0: i32, %arg1: i32) -> (i32, i32) {
    %c0_i32 = arith.constant 0 : i32
    return %arg1, %arg0 : i32, i32
  }
  func.func @transform_7(%arg0: i32, %arg1: i32) -> (i32, i32) {
    %c0_i32 = arith.constant 0 : i32
    return %arg1, %arg0 : i32, i32
  }
  func.func @transform_8(%arg0: i32, %arg1: i32) -> (i32, i32) {
    %c0_i32 = arith.constant 0 : i32
    %c0_i32_0 = arith.constant 0 : i32
    return %c0_i32, %arg0 : i32, i32
  }
}

</mosaic_0001>

<llo_original>
// kernel: bayesian_network_forward.1
$region0: #{bayesian_network_forward.1}
  #allocation0 [shape = 'u32[]', space=smem, size = 0x4, offset = 0x4, fixed_abs, tag = 'smem constant byte address 0x4 - core index']
  #allocation1 [shape = 'u32[144,128]{1,0:T(1,128)}', space=vmem, size = 0x12000, scoped, tag = 'internal scratch']
  #allocation2 [shape = 'f32[8,128]{1,0:T(8,128)}', space=vmem, size = 0x1000, scoped, tag = 'scratch operand']
  #allocation3 [shape = 'f32[8,128]{1,0:T(8,128)}', space=vmem, size = 0x1000, scoped, tag = 'scratch operand']
  #allocation4 [shape = 'f32[1,128]{1,0:T(1,128)}', space=vmem, size = 0x200, scoped, tag = 'scratch operand']
  %s0 = inlined_call_operand.vmem [shape: f32[16,8], index: 0, kind: input, shape index: {}]
  %s1 = inlined_call_operand.vmem [shape: bf16[8,128], index: 1, kind: input, shape index: {}]
  %s2 = inlined_call_operand.vmem [shape: bf16[8,128], index: 2, kind: input, shape index: {}]
  %s3 = inlined_call_operand.vmem [shape: bf16[8,128], index: 3, kind: input, shape index: {}]
  %s4 = inlined_call_operand.vmem [shape: f32[1,128], index: 4, kind: input, shape index: {}]
  %s5 = inlined_call_operand.vmem [shape: f32[1,128], index: 5, kind: input, shape index: {}]
  %s6 = inlined_call_operand.vmem [shape: f32[16,128], index: 6, kind: input, shape index: {}]
  %s7 = inlined_call_operand.vmem [shape: f32[16,128], index: 7, kind: output, shape index: {0}]
  %s8 = inlined_call_operand.hbm [shape: f32[1,128], index: 8, kind: output, shape index: {1}]
  %9 = xla_tuple %s7, %s8
  %s10 = sld [smem:[#allocation0]]
  $region50: #{bayesian_network_forward.1} parent=0
    _
  %s12 = ssub.s32 1, %s10
  %s13 = scalar_select 0, %s12, %s10
  $region1: #{bayesian_network_forward.1} parent=0
    #allocation5 [shape = 'u8[512]{0}', space=vmem, size = 0x400, scoped, tag = 'output window, operand 1, single buffered']
    #allocation6 [shape = 's32[1]{0}', space=sflag, size = 0x4, scoped, tag = 'scoped memory for bayesian_network_forward.1']
    %14 = vsyncpa [#allocation6], 0
    // Predicated region
    $region2: #{bayesian_network_forward.1} parent=1 // pred_check
      _
    $region3: #{bayesian_network_forward.1} parent=1 // pred_check_branch
      %16 = sbr.rel (0) target = $region5
    $region4: #{bayesian_network_forward.1} parent=1 // pred_region
      _
    $region5: #{bayesian_network_forward.1} parent=1 // pred_fallthru
      _
    // Predicated region
    $region6: #{bayesian_network_forward.1} parent=1 // pred_check
      _
    $region7: #{bayesian_network_forward.1} parent=1 // pred_check_branch
      %18 = sbr.rel (0) target = $region9
    $region8: #{bayesian_network_forward.1} parent=1 // pred_region
      _
    $region9: #{bayesian_network_forward.1} parent=1 // pred_fallthru
      _
    // Predicated region
    $region10: #{bayesian_network_forward.1} parent=1 // pred_check
      _
    $region11: #{bayesian_network_forward.1} parent=1 // pred_check_branch
      %20 = sbr.rel (0) target = $region13
    $region12: #{bayesian_network_forward.1} parent=1 // pred_region
      _
    $region13: #{bayesian_network_forward.1} parent=1 // pred_fallthru
      _
    // Predicated region
    $region14: #{bayesian_network_forward.1} parent=1 // pred_check
      _
    $region15: #{bayesian_network_forward.1} parent=1 // pred_check_branch
      %22 = sbr.rel (0) target = $region17
    $region16: #{bayesian_network_forward.1} parent=1 // pred_region
      _
    $region17: #{bayesian_network_forward.1} parent=1 // pred_fallthru
      _
    // Predicated region
    $region18: #{bayesian_network_forward.1} parent=1 // pred_check
      _
    $region19: #{bayesian_network_forward.1} parent=1 // pred_check_branch
      %24 = sbr.rel (0) target = $region21
    $region20: #{bayesian_network_forward.1} parent=1 // pred_region
      _
    $region21: #{bayesian_network_forward.1} parent=1 // pred_fallthru
      _
    // Predicated region
    $region22: #{bayesian_network_forward.1} parent=1 // pred_check
      _
    $region23: #{bayesian_network_forward.1} parent=1 // pred_check_branch
      %26 = sbr.rel (0) target = $region25
    $region24: #{bayesian_network_forward.1} parent=1 // pred_region
      _
    $region25: #{bayesian_network_forward.1} parent=1 // pred_fallthru
      _
    // Predicated region
    $region26: #{bayesian_network_forward.1} parent=1 // pred_check
      _
    $region27: #{bayesian_network_forward.1} parent=1 // pred_check_branch
      %28 = sbr.rel (0) target = $region29
    $region28: #{bayesian_network_forward.1} parent=1 // pred_region
      _
    $region29: #{bayesian_network_forward.1} parent=1 // pred_fallthru
      _
    %p29 = scmp.eq.s32.totalorder 0, 0
    // Predicated region
    $region30: #{bayesian_network_forward.1} parent=1 // pred_check
      %p30 = pneg %p29
    $region31: #{bayesian_network_forward.1} parent=1 // pred_check_branch
      %32 = sbr.rel (%p30) target = $region33
    $region32: #{bayesian_network_forward.1} parent=1 // pred_region
      %v33 = vld [vmem:[%s1] sm:$0xf]
      %v34 = vunpack.c.l.bf16 %v33
      %v35 = vld [vmem:[%s2] sm:$0xf]
      %v36 = vunpack.c.l.bf16 %v35
      %v37 = vld [vmem:[%s3] sm:$0xf]
      %v38 = vunpack.c.l.bf16 %v37
      %v39 = vmax.f32 %v38, 0.0
      %v40 = vand.u32 2147483647, %v38
      %v41 = vsub.f32 0.0, %v40
      %v42 = vmul.f32 %v41, 1.442695
      %v43 = vpow.pop %v42
      %v44 = vadd.f32 %v43, 1.0
      %v45 = vlog2.pop %v44
      %v46 = vmul.f32 %v45, 0.6931472
      %v47 = vmul.f32 -0.5, %v43
      %v48 = vadd.f32 %v47, 1.0
      %v49 = vmul.f32 %v48, %v43
      %v50 = vand.u32 2147483647, %v43
      %vm51 = vcmp.lt.f32.partialorder %v50, 0.0004427343
      %v52 = vsel %vm51, %v49, %v46
      %v53 = vadd.f32 %v39, %v52
      %v54 = vsub.f32 %v53, %v38
      %v55 = vsub.f32 0.0, %v54
      %v56 = vmul.f32 %v55, 1.442695
      %v57 = vpow.pop %v56
      %v58 = vmax.f32 %v36, 0.0
      %v59 = vand.u32 2147483647, %v36
      %v60 = vsub.f32 0.0, %v59
      %v61 = vmul.f32 %v60, 1.442695
      %v62 = vpow.pop %v61
      %v63 = vadd.f32 %v62, 1.0
      %v64 = vlog2.pop %v63
      %v65 = vmul.f32 %v64, 0.6931472
      %v66 = vmul.f32 -0.5, %v62
      %v67 = vadd.f32 %v66, 1.0
      %v68 = vmul.f32 %v67, %v62
      %v69 = vand.u32 2147483647, %v62
      %vm70 = vcmp.lt.f32.partialorder %v69, 0.0004427343
      %v71 = vsel %vm70, %v68, %v65
      %v72 = vadd.f32 %v58, %v71
      %v73 = vmul.f32 %v34, %v57
      %v74 = vmul.f32 %v72, %v72
      %v75 = vsub.f32 1.0, %v57
      %v76 = vmul.f32 %v75, %v34
      %v77 = vmul.f32 %v76, %v34
      %v78 = vadd.f32 %v74, %v77
      %v79 = vmul.f32 %v57, %v78
      %80 = vst [vmem:[#allocation2] sm:$0xff] %v73
      %81 = vst [vmem:[#allocation3] sm:$0xff] %v79
      %v82 = vld [vmem:[%s4] sm:$0x1]
      %v83 = vld [vmem:[%s5] sm:$0x1]
      %v84 = vmax.f32 %v83, 0.0
      %v85 = vand.u32 2147483647, %v83
      %v86 = vsub.f32 0.0, %v85
      %v87 = vmul.f32 %v86, 1.442695
      %v88 = vpow.pop %v87
      %v89 = vadd.f32 %v88, 1.0
      %v90 = vlog2.pop %v89
      %v91 = vmul.f32 %v90, 0.6931472
      %v92 = vmul.f32 -0.5, %v88
      %v93 = vadd.f32 %v92, 1.0
      %v94 = vmul.f32 %v93, %v88
      %v95 = vand.u32 2147483647, %v88
      %vm96 = vcmp.lt.f32.partialorder %v95, 0.0004427343
      %v97 = vsel %vm96, %v94, %v91
      %v98 = vadd.f32 %v84, %v97
      %v99 = vmul.f32 %v98, %v98
      %100 = vst [vmem:[#allocation4] sm:$0x1] %v99
      %v101 = vlog2.pop %v72
      %v102 = vmul.f32 %v101, 0.6931472
      %v103 = vsub.f32 4.1051702, %v102
      %v104 = vsub.f32 %v103, %v54
      %v105 = vmul.f32 %v34, %v34
      %v106 = vadd.f32 %v74, %v105
      %v107 = vmul.f32 %v106, 0.0008
      %v108 = vadd.f32 %v104, %v107
      %v109 = vmul.f32 %v57, %v108
      %v110 = vsub.f32 0.0, %v53
      %v111 = vsub.f32 %v110, -0.2876821
      %v112 = vmul.f32 %v75, %v111
      %v113 = vadd.f32 %v109, %v112
      %v114 = vlog2.pop %v98
      %v115 = vmul.f32 %v114, 0.6931472
      %v116 = vsub.f32 0.0, %v115
      %v117 = vsub.f32 %v116, 0.5
      %v118 = vmul.f32 %v82, %v82
      %v119 = vadd.f32 %v99, %v118
      %v120 = vmul.f32 %v119, 0.5
      %v121 = vadd.f32 %v117, %v120
      %v122 = vrot.slane %v113, 4
      %v123 = vadd.f32 %v113, %v122
      %v124 = vrot.slane %v123, 2
      %v125 = vadd.f32 %v123, %v124
      %v126 = vrot.slane %v125, 1
      %v127 = vadd.f32 %v125, %v126
      %v128 = vadd.f32 %v127, %v121
      %129 = vst [vmem:[#allocation5] sm:$0x1] %v128
    $region33: #{bayesian_network_forward.1} parent=1 // pred_fallthru
      _
    %v130 = vld [vmem:[%s0] sm:$0xff]
    %v131 = vld [vmem:[%s0 + $0x8] sm:$0xff]
    %v132 = vmul.f32 %v130, %v130
    %v133 = vmul.f32 %v131, %v131
    %v134 = vld [vmem:[#allocation2] sm:$0xff]
    %v135 = vld [vmem:[%s4] sm:$0x1]
    %v137 = vlaneseq
    %v138 = vshrl.u32 %v137, 7
    %v139 = vsub.s32 0, %v138
    %v140 = vrot.slane %v135, %v139
    %vm142 = vcmask 64512
    %v144 = vsel %vm142, %v130, 0
    %v147 = vsel %vm142, %v131, 0
    %149 = vmatprep.subr.mxu0 0.0
    %150 = vmatpush1.msra.mxu0 %v134
    %151 = vmatprep.subr.mxu0 0.0
    %152 = vmatpush1.msra.mxu0 0.0
    %153 = vmatprep.subr.mxu0 0.0
    %154 = vmatpush1.msra.mxu0 0.0
    %155 = vmatprep.subr.mxu0 0.0
    %156 = vmatpush1.msra.mxu0 0.0
    %157 = vmatprep.subr.mxu0 0.0
    %158 = vmatpush1.msra.mxu0 0.0
    %159 = vmatprep.subr.mxu0 0.0
    %160 = vmatpush1.msra.mxu0 0.0
    %161 = vmatprep.subr.mxu0 0.0
    %162 = vmatpush1.msra.mxu0 0.0
    %163 = vmatprep.subr.mxu0 0.0
    %164 = vmatpush1.msra.mxu0 0.0
    %165 = vmatprep.subr.mxu0 0.0
    %166 = vmatpush1.msra.mxu0 0.0
    %167 = vmatprep.subr.mxu0 0.0
    %168 = vmatpush1.msra.mxu0 0.0
    %169 = vmatprep.subr.mxu0 0.0
    %170 = vmatpush1.msra.mxu0 0.0
    %171 = vmatprep.subr.mxu0 0.0
    %172 = vmatpush1.msra.mxu0 0.0
    %173 = vmatprep.subr.mxu0 0.0
    %174 = vmatpush1.msra.mxu0 0.0
    %175 = vmatprep.subr.mxu0 0.0
    %176 = vmatpush1.msra.mxu0 0.0
    %177 = vmatprep.subr.mxu0 0.0
    %178 = vmatpush1.msra.mxu0 0.0
    %179 = vmatprep.subr.mxu0 0.0
    %180 = vmatpush1.msra.mxu0 0.0
    %181 = vmatprep.subr.mxu0 0.0
    %182 = vmatpush1.msra.mxu0 0.0
    %183 = vmatprep.subr.mxu0 0.0
    %184 = vmatpush1.msra.mxu0 0.0
    %185 = vmatprep.subr.mxu0 0.0
    %186 = vmatpush1.msra.mxu0 0.0
    %187 = vmatprep.subr.mxu0 0.0
    %188 = vmatpush1.msra.mxu0 0.0
    %189 = vmatprep.subr.mxu0 0.0
    %190 = vmatpush1.msra.mxu0 0.0
    %191 = vmatprep.subr.mxu0 0.0
    %192 = vmatpush1.msra.mxu0 0.0
    %193 = vmatprep.subr.mxu0 0.0
    %194 = vmatpush1.msra.mxu0 0.0
    %195 = vmatprep.subr.mxu0 0.0
    %196 = vmatpush1.msra.mxu0 0.0
    %197 = vmatprep.subr.mxu0 0.0
    %198 = vmatpush1.msra.mxu0 0.0
    %199 = vmatprep.subr.mxu0 0.0
    %200 = vmatpush1.msra.mxu0 0.0
    %201 = vmatprep.subr.mxu0 0.0
    %202 = vmatpush1.msra.mxu0 0.0
    %203 = vmatprep.subr.mxu0 0.0
    %204 = vmatpush1.msra.mxu0 0.0
    %205 = vmatprep.subr.mxu0 0.0
    %206 = vmatpush1.msra.mxu0 0.0
    %207 = vmatprep.subr.mxu0 0.0
    %208 = vmatpush1.msra.mxu0 0.0
    %209 = vmatprep.subr.mxu0 0.0
    %210 = vmatpush1.msra.mxu0 0.0
    %211 = vmatprep.subr.mxu0 0.0
    %212 = vmatpush1.msra.mxu0 0.0
    %213 = vmatprep.mubr.f32.mxu0 0.0
    %214 = vmatmul.mubr.f32.gmra.mrb[0].mxu0 %v144
    %v215 = vpop.f32.mrb[0].mxu0
    %v216 = vadd.f32 %v140, %v215
    %v217 = vpop.f32.mrb[0].mxu0
    %218 = vmatprep.mubr.f32.mxu0 0.0
    %219 = vmatmul.mubr.f32.gmra.mrb[0].mxu0 %v147
    %v220 = vpop.f32.mrb[0].mxu0
    %v221 = vadd.f32 %v140, %v220
    %v222 = vpop.f32.mrb[0].mxu0
    %223 = vdwg.mxu0
    %v224 = vld [vmem:[#allocation3] sm:$0xff]
    %v225 = vld [vmem:[#allocation4] sm:$0x1]
    %v227 = vlaneseq
    %v228 = vshrl.u32 %v227, 7
    %v229 = vsub.s32 0, %v228
    %v230 = vrot.slane %v225, %v229
    %v233 = vsel %vm142, %v132, 0
    %v236 = vsel %vm142, %v133, 0
    %238 = vmatprep.subr.mxu0 0.0
    %239 = vmatpush1.msra.mxu0 %v224
    %240 = vmatprep.subr.mxu0 0.0
    %241 = vmatpush1.msra.mxu0 0.0
    %242 = vmatprep.subr.mxu0 0.0
    %243 = vmatpush1.msra.mxu0 0.0
    %244 = vmatprep.subr.mxu0 0.0
    %245 = vmatpush1.msra.mxu0 0.0
    %246 = vmatprep.subr.mxu0 0.0
    %247 = vmatpush1.msra.mxu0 0.0
    %248 = vmatprep.subr.mxu0 0.0
    %249 = vmatpush1.msra.mxu0 0.0
    %250 = vmatprep.subr.mxu0 0.0
    %251 = vmatpush1.msra.mxu0 0.0
    %252 = vmatprep.subr.mxu0 0.0
    %253 = vmatpush1.msra.mxu0 0.0
    %254 = vmatprep.subr.mxu0 0.0
    %255 = vmatpush1.msra.mxu0 0.0
    %256 = vmatprep.subr.mxu0 0.0
    %257 = vmatpush1.msra.mxu0 0.0
    %258 = vmatprep.subr.mxu0 0.0
    %259 = vmatpush1.msra.mxu0 0.0
    %260 = vmatprep.subr.mxu0 0.0
    %261 = vmatpush1.msra.mxu0 0.0
    %262 = vmatprep.subr.mxu0 0.0
    %263 = vmatpush1.msra.mxu0 0.0
    %264 = vmatprep.subr.mxu0 0.0
    %265 = vmatpush1.msra.mxu0 0.0
    %266 = vmatprep.subr.mxu0 0.0
    %267 = vmatpush1.msra.mxu0 0.0
    %268 = vmatprep.subr.mxu0 0.0
    %269 = vmatpush1.msra.mxu0 0.0
    %270 = vmatprep.subr.mxu0 0.0
    %271 = vmatpush1.msra.mxu0 0.0
    %272 = vmatprep.subr.mxu0 0.0
    %273 = vmatpush1.msra.mxu0 0.0
    %274 = vmatprep.subr.mxu0 0.0
    %275 = vmatpush1.msra.mxu0 0.0
    %276 = vmatprep.subr.mxu0 0.0
    %277 = vmatpush1.msra.mxu0 0.0
    %278 = vmatprep.subr.mxu0 0.0
    %279 = vmatpush1.msra.mxu0 0.0
    %280 = vmatprep.subr.mxu0 0.0
    %281 = vmatpush1.msra.mxu0 0.0
    %282 = vmatprep.subr.mxu0 0.0
    %283 = vmatpush1.msra.mxu0 0.0
    %284 = vmatprep.subr.mxu0 0.0
    %285 = vmatpush1.msra.mxu0 0.0
    %286 = vmatprep.subr.mxu0 0.0
    %287 = vmatpush1.msra.mxu0 0.0
    %288 = vmatprep.subr.mxu0 0.0
    %289 = vmatpush1.msra.mxu0 0.0
    %290 = vmatprep.subr.mxu0 0.0
    %291 = vmatpush1.msra.mxu0 0.0
    %292 = vmatprep.subr.mxu0 0.0
    %293 = vmatpush1.msra.mxu0 0.0
    %294 = vmatprep.subr.mxu0 0.0
    %295 = vmatpush1.msra.mxu0 0.0
    %296 = vmatprep.subr.mxu0 0.0
    %297 = vmatpush1.msra.mxu0 0.0
    %298 = vmatprep.subr.mxu0 0.0
    %299 = vmatpush1.msra.mxu0 0.0
    %300 = vmatprep.subr.mxu0 0.0
    %301 = vmatpush1.msra.mxu0 0.0
    %302 = vmatprep.mubr.f32.mxu0 0.0
    %303 = vmatmul.mubr.f32.gmra.mrb[0].mxu0 %v233
    %v304 = vpop.f32.mrb[0].mxu0
    %v305 = vadd.f32 %v230, %v304
    %v306 = vpop.f32.mrb[0].mxu0
    %307 = vmatprep.mubr.f32.mxu0 0.0
    %308 = vmatmul.mubr.f32.gmra.mrb[0].mxu0 %v236
    %v309 = vpop.f32.mrb[0].mxu0
    %v310 = vadd.f32 %v230, %v309
    %v311 = vpop.f32.mrb[0].mxu0
    %312 = vdwg.mxu0
    %v313 = vrsqrt.pop %v305
    %v314 = vmul.f32 %v305, %v313
    %vm315 = vcmp.eq.f32.partialorder %v305, inf
    %v316 = vsel %vm315, %v305, %v314
    %vm317 = vcmp.eq.f32.partialorder %v305, 0.0
    %v318 = vand.u32 %v305, 2147483648
    %v319 = vsel %vm317, %v318, %v316
    %v320 = vrsqrt.pop %v310
    %v321 = vmul.f32 %v310, %v320
    %vm322 = vcmp.eq.f32.partialorder %v310, inf
    %v323 = vsel %vm322, %v310, %v321
    %vm324 = vcmp.eq.f32.partialorder %v310, 0.0
    %v325 = vand.u32 %v310, 2147483648
    %v326 = vsel %vm324, %v325, %v323
    %v327 = vld [vmem:[%s6] sm:$0xff]
    %v328 = vld [vmem:[%s6 + $0x8] sm:$0xff]
    %v329 = vmul.f32 %v319, %v327
    %v330 = vmul.f32 %v326, %v328
    %v331 = vadd.f32 %v216, %v329
    %v332 = vadd.f32 %v221, %v330
    %333 = vst [vmem:[%s7] sm:$0xff] %v331
    %334 = vst [vmem:[%s7 + $0x8] sm:$0xff] %v332
    // Predicated region
    $region34: #{bayesian_network_forward.1} parent=1 // pred_check
      _
    $region35: #{bayesian_network_forward.1} parent=1 // pred_check_branch
      %336 = sbr.rel (0) target = $region37
    $region36: #{bayesian_network_forward.1} parent=1 // pred_region
      _
    $region37: #{bayesian_network_forward.1} parent=1 // pred_fallthru
      _
    // Predicated region
    $region38: #{bayesian_network_forward.1} parent=1 // pred_check
      _
    $region39: #{bayesian_network_forward.1} parent=1 // pred_check_branch
      %338 = sbr.rel (0) target = $region41
    $region40: #{bayesian_network_forward.1} parent=1 // pred_region
      %s340 = ssub.s32 16, 16
      %341 = vsyncadd [#allocation6], %s340
      %s343 = sshll.u32 [#allocation5], 4
      %s344 = int_to_ptr.vmem [resolvable:$true] %s343
      %346 = dma.vmem_to_hbm [thread:$0]  %s344, 16, %s8, [#allocation6]
    $region41: #{bayesian_network_forward.1} parent=1 // pred_fallthru
      _
    // Predicated region
    $region42: #{bayesian_network_forward.1} parent=1 // pred_check
      _
    $region43: #{bayesian_network_forward.1} parent=1 // pred_check_branch
      %348 = sbr.rel (0) target = $region45
    $region44: #{bayesian_network_forward.1} parent=1 // pred_region
      _
    $region45: #{bayesian_network_forward.1} parent=1 // pred_fallthru
      _
    // Predicated region
    $region46: #{bayesian_network_forward.1} parent=1 // pred_check
      _
    $region47: #{bayesian_network_forward.1} parent=1 // pred_check_branch
      %350 = sbr.rel (0) target = $region49
    $region48: #{bayesian_network_forward.1} parent=1 // pred_region
      %351 = dma.done [#allocation6], 16
    $region49: #{bayesian_network_forward.1} parent=1 // pred_fallthru
      _
    %352 = vsyncpa [#allocation6], 1

</llo_original>
